<compile_context>
chip_gen: v6e
topology: v6e:2x2x1
jax: 0.10.0
libtpu: 0.0.40
codegen_flags: <defaults>
</compile_context>

<pallas_src>
import functools

import jax
import jax.numpy as jnp
from jax import lax
from jax.experimental import pallas as pl
from jax.experimental.pallas import tpu as pltpu

OUTPUT_DIM = 128   # encoder output dim (module default output_dim=128)
HIDDEN = 64        # pre[0]: Linear(output_dim, 64)
N_OUTPUT = 1       # pre[2]: Linear(64, n_output)
EPS = 1e-12        # F.normalize default eps

_SUB = 512         # rows per inner strip: 512x128 f32 = 256 KiB streamed, ~32 live vregs


def _round_up(v, m):
    return ((v + m - 1) // m) * m


def _choose_tiles(n_rows, tile_m, sub, granule):
    """Pick (tile rows, inner-strip rows).

    Tiles are whole multiples of the inner strip; the grid keeps >= 2 steps when
    there is enough work so a v7x megacore splits the rows across both TCs.
    `granule` is the sublane packing granule (8 for f32, 16 for bf16).
    """
    n_r = _round_up(max(n_rows, 1), granule)
    if n_r <= sub:                       # small input: one strip per tile
        tm = max(granule, min(n_r, _round_up(pl.cdiv(n_rows, 2), granule)))
        return tm, tm
    half = _round_up(pl.cdiv(n_rows, 2), sub)
    tm = max(sub, min(_round_up(tile_m, sub), half))
    return tm, sub


def _head_kernel(x_ref, w_ref, b_ref, o_ref, *, sub, n_sub):
    """Fused: L2 row-normalize -> folded Linear(128,64)->Dropout(eval)->Linear(64,1).

    x_ref: (TM, D) input rows, w_ref: (D, 1) folded weight, b_ref: (1, 1) folded bias,
    o_ref: (1, 1, TM) lane-dense output (row i -> lane i).
    Processed in static strips of `sub` rows so live vregs stay bounded.
    """
    for c in range(n_sub):                                     # static, fully unrolled
        r0 = c * sub
        xs = x_ref[pl.ds(r0, sub), :]                          # (sub, D), streaming dtype
        xf = xs.astype(jnp.float32)
        # ||x||^2 per row: VPU multiply + XLU lane reduction.
        sumsq = jnp.sum(xf * xf, axis=-1, keepdims=True)       # (sub, 1)
        # 1/max(||x||, eps) == rsqrt(max(||x||^2, eps^2)) -- single EUP op.
        inv = lax.rsqrt(jnp.maximum(sumsq, EPS * EPS))
        # 128->1 projection on the (otherwise idle) MXU, f32 accumulate.
        proj = jnp.dot(xs, w_ref[...], preferred_element_type=jnp.float32)  # (sub, 1)
        col = inv * proj + b_ref[...]                          # (sub, 1) f32
        # Relayout column -> lane-dense row (XLU) and store unmasked, full-lane vst.
        o_ref[:, :, pl.ds(r0, sub)] = col.reshape(1, 1, sub)


def pre_head(x1, w1, b1, w2, b2, *, tile_m=4096, x_dtype=jnp.float32):
    """xf = F.normalize(x1); xc = self.pre(xf).  x1: (N, OUTPUT_DIM) -> (N, 1).

    `x_dtype=jnp.bfloat16` streams half the HBM bytes (accumulation stays f32).
    """
    N, D = x1.shape
    n_out = w2.shape[0]
    assert n_out == 1, "fused head assumes n_output == 1 (module default)"

    # Fold the two Linears on the host (valid in eval mode: Dropout is identity and
    # there is no nonlinearity between them).
    w_col = (w2 @ w1).reshape(D, 1).astype(x_dtype)             # (D, 1) folded weight
    b_eff = (w2 @ b1 + b2).reshape(1, 1).astype(jnp.float32)    # (1, 1) folded bias

    granule = 16 if jnp.dtype(x_dtype).itemsize == 2 else 8
    tm, sub = _choose_tiles(N, tile_m, _SUB, granule)
    n_sub = tm // sub
    grid = pl.cdiv(N, tm)   # ragged last x block is fine: math is strictly row-wise
                            # and padded output lanes are sliced away on the host.

    itemsize = jnp.dtype(x_dtype).itemsize
    need = (2 * tm * D * itemsize      # double-buffered x tiles
            + 2 * tm * 4               # double-buffered lane-dense f32 output tiles
            + D * itemsize + 4         # weights / bias
            + (1 << 16))               # headroom
    vmem_limit = int(min(64 * 2**20, max(16 * 2**20, 2 * need)))

    out3 = pl.pallas_call(
        functools.partial(_head_kernel, sub=sub, n_sub=n_sub),
        out_shape=jax.ShapeDtypeStruct((grid, 1, tm), jnp.float32),
        grid_spec=pltpu.PrefetchScalarGridSpec(
            num_scalar_prefetch=0,
            grid=(grid,),
            in_specs=[
                pl.BlockSpec((tm, D), lambda i: (i, 0)),        # x tile (pipelined)
                pl.BlockSpec((D, 1), lambda i: (0, 0)),         # folded weight (VMEM-resident)
                pl.BlockSpec((1, 1), lambda i: (0, 0)),         # folded bias
            ],
            out_specs=pl.BlockSpec((1, 1, tm), lambda i: (i, 0, 0)),  # lane-dense
        ),
        compiler_params=pltpu.CompilerParams(
            dimension_semantics=("parallel",),   # lets v7x shard the grid across its 2 TCs
            vmem_limit_bytes=vmem_limit),
    )(x1.astype(x_dtype), w_col, b_eff)

    # Drop padded tail lanes; restore the module's (N, n_output) shape.
    return out3.reshape(-1)[:N].reshape(N, n_out)


def _head_reference(x1, w1, b1, w2, b2):
    """Pure-JAX reference of the module head (normalize + two Linears, eval dropout)."""
    norm = jnp.sqrt(jnp.sum(x1 * x1, axis=-1, keepdims=True))
    xf = x1 / jnp.maximum(norm, EPS)
    h = xf @ w1.T + b1
    return h @ w2.T + b2


def init_params(key):
    """Deterministic parameter init matching the module's shapes."""
    k1, k2, k3, k4, k5, k6 = jax.random.split(key, 6)
    return {
        # pre: Linear(output_dim, 64), Dropout, Linear(64, n_output)
        "w1": jax.random.normal(k1, (HIDDEN, OUTPUT_DIM), jnp.float32) * 0.05,
        "b1": jax.random.normal(k2, (HIDDEN,), jnp.float32) * 0.01,
        "w2": jax.random.normal(k3, (N_OUTPUT, HIDDEN), jnp.float32) * 0.05,
        "b2": jax.random.normal(k4, (N_OUTPUT,), jnp.float32) * 0.01,
        # stand-in encoder params (encoder is an external dependency, None in module)
        "we": jax.random.normal(k5, (32, OUTPUT_DIM), jnp.float32) * 0.1,
        "be": jax.random.normal(k6, (OUTPUT_DIM,), jnp.float32) * 0.01,
    }


def standin_encoder(params, x, edge_index, batch):
    """Deterministic stand-in for the injected `encoder` (plain JAX glue).

    Returns x1: (N, OUTPUT_DIM) node embeddings and w = (aux, weight) where
    weight has length len_w + num_nodes, mirroring the module's expectations.
    """
    x1 = jnp.tanh(x @ params["we"] + params["be"])            # (N, OUTPUT_DIM)
    len_w = edge_index.shape[1]
    n_nodes = x.shape[0]
    weight = jax.nn.sigmoid(
        jnp.sin(jnp.arange(len_w + n_nodes, dtype=jnp.float32) * 0.37))
    return x1, (None, weight)


def model_forward(params, data):
    """Mirrors Model.forward(data) -> (out, y, edge_weight, x_weight)."""
    x, edge_index, batch, y = data["x"], data["edge_index"], data["batch"], data["y"]
    x1, w = standin_encoder(params, x, edge_index, batch)
    # xf = F.normalize(x1); xc = self.pre(xf); out = xc.reshape(-1)  -- fused kernel
    # TODO(synk): training-mode dropout (and hence the un-collapsed two-matmul form)
    # would need pltpu.prng_*; eval semantics are implemented.
    xc = pre_head(x1, params["w1"], params["b1"], params["w2"], params["b2"])
    out = xc.reshape(-1)
    len_w = edge_index.shape[1]
    weight = w[1]
    edge_weight = weight[:len_w]
    x_weight = weight[len_w:]
    return out, y, edge_weight, x_weight


if __name__ == "__main__":
    key = jax.random.PRNGKey(0)
    kp, kx, ke, ky = jax.random.split(key, 4)

    params = init_params(kp)

    n_nodes = 16      # total nodes across the batched graphs
    n_feat = 32       # raw node feature dim fed to the encoder
    n_edges = 24
    n_graphs = 2

    data = {
        "x": jax.random.normal(kx, (n_nodes, n_feat), jnp.float32),
        "edge_index": jax.random.randint(ke, (2, n_edges), 0, n_nodes, jnp.int32),
        "batch": jnp.repeat(jnp.arange(n_graphs, dtype=jnp.int32),
                            n_nodes // n_graphs),
        "y": jax.random.normal(ky, (n_graphs,), jnp.float32),
    }

    out, y, edge_weight, x_weight = model_forward(params, data)
    jax.block_until_ready((out, y, edge_weight, x_weight))

    # Correctness check of the fused kernel against the pure-JAX module head (f32 path).
    x1_ref, _ = standin_encoder(params, data["x"], data["edge_index"], data["batch"])
    ref = _head_reference(x1_ref, params["w1"], params["b1"],
                          params["w2"], params["b2"]).reshape(-1)
    assert jnp.allclose(out, ref, atol=5e-4, rtol=1e-2), "kernel mismatch vs reference (f32)"

    # Optional bandwidth-halving bf16 streaming path (f32 accumulation), looser tolerance.
    xc_bf16 = pre_head(x1_ref, params["w1"], params["b1"], params["w2"], params["b2"],
                       x_dtype=jnp.bfloat16)
    jax.block_until_ready(xc_bf16)
    assert jnp.allclose(xc_bf16.reshape(-1), ref, atol=2e-2, rtol=5e-2), \
        "kernel mismatch vs reference (bf16)"

    assert out.shape == (n_nodes,)
    assert edge_weight.shape == (n_edges,)
    assert x_weight.shape == (n_nodes,)
    assert y.shape == (n_graphs,)
    print("KERNEL_OK")
</pallas_src>

<mosaic_0001>
module attributes {stable_mosaic.version = 11 : i64} {
  func.func @_head_kernel(%arg0: i32, %arg1: memref<8x128xf32, #tpu.memory_space<vmem>>, %arg2: memref<128x1xf32, #tpu.memory_space<vmem>>, %arg3: memref<1x1xf32, #tpu.memory_space<vmem>>, %arg4: memref<1x1x8xf32, #tpu.memory_space<vmem>>) attributes {dimension_semantics = [#tpu.dimension_semantics<parallel>], iteration_bounds = array<i64: 2>, scalar_prefetch = 0 : i64, scratch_operands = 0 : i64, tpu.core_type = #tpu.core_type<tc>, window_params = [{transform_indices = @transform_0, window_bounds = array<i64: 8, 128>}, {pipeline_mode = #tpu.pipeline_mode<synchronous>, transform_indices = @transform_1, window_bounds = array<i64: 128, 1>}, {pipeline_mode = #tpu.pipeline_mode<synchronous>, transform_indices = @transform_2, window_bounds = array<i64: 1, 1>}, {transform_indices = @transform_3, window_bounds = array<i64: 1, 1, 8>}]} {
    %c0 = arith.constant 0 : index
    %c0_0 = arith.constant 0 : index
    %0 = vector.load %arg1[%c0, %c0_0] : memref<8x128xf32, #tpu.memory_space<vmem>>, vector<8x128xf32>
    %1 = arith.mulf %0, %0 : vector<8x128xf32>
    %cst = arith.constant dense<0.000000e+00> : vector<8xf32>
    %2 = vector.multi_reduction <add>, %1, %cst [1] : vector<8x128xf32> to vector<8xf32>
    %3 = vector.shape_cast %2 : vector<8xf32> to vector<8x1xf32>
    %cst_1 = arith.constant 1.000000e-24 : f32
    %4 = vector.broadcast %cst_1 : f32 to vector<8x1xf32>
    %5 = arith.maximumf %3, %4 : vector<8x1xf32>
    %6 = math.rsqrt %5 : vector<8x1xf32>
    %c0_2 = arith.constant 0 : index
    %c0_3 = arith.constant 0 : index
    %7 = vector.load %arg2[%c0_2, %c0_3] : memref<128x1xf32, #tpu.memory_space<vmem>>, vector<128x1xf32>
    %cst_4 = arith.constant dense<0.000000e+00> : vector<8x1xf32>
    %8 = tpu.matmul %0, %7, %cst_4 {dimension_numbers = #tpu.dot_dimension_numbers<[1], [0], [0], [1], [0, 0, 1, 1], [], []>} : vector<8x128xf32>, vector<128x1xf32>, vector<8x1xf32> -> vector<8x1xf32>
    %9 = arith.mulf %6, %8 : vector<8x1xf32>
    %c0_5 = arith.constant 0 : index
    %c0_6 = arith.constant 0 : index
    %10 = vector.load %arg3[%c0_5, %c0_6] : memref<1x1xf32, #tpu.memory_space<vmem>>, vector<1x1xf32>
    %11 = vector.broadcast %10 : vector<1x1xf32> to vector<8x1xf32>
    %12 = arith.addf %9, %11 : vector<8x1xf32>
    %13 = vector.shape_cast %12 : vector<8x1xf32> to vector<1x1x8xf32>
    %c0_7 = arith.constant 0 : index
    %c0_8 = arith.constant 0 : index
    %c0_9 = arith.constant 0 : index
    %14 = vector.load %arg4[%c0_7, %c0_8, %c0_9] : memref<1x1x8xf32, #tpu.memory_space<vmem>>, vector<1x1x8xf32>
    tpu.vector_store %arg4[%c0_7, %c0_8, %c0_9], %13 {strides = array<i32>} : memref<1x1x8xf32, #tpu.memory_space<vmem>>, vector<1x1x8xf32>,
    return
  }
  func.func @transform_0(%arg0: i32) -> (i32, i32) {
    %c0_i32 = arith.constant 0 : i32
    %c0_i32_0 = arith.constant 0 : i32
    return %arg0, %c0_i32 : i32, i32
  }
  func.func @transform_1(%arg0: i32) -> (i32, i32) {
    %c0_i32 = arith.constant 0 : i32
    %c0_i32_0 = arith.constant 0 : i32
    %c0_i32_1 = arith.constant 0 : i32
    return %c0_i32, %c0_i32_0 : i32, i32
  }
  func.func @transform_2(%arg0: i32) -> (i32, i32) {
    %c0_i32 = arith.constant 0 : i32
    %c0_i32_0 = arith.constant 0 : i32
    %c0_i32_1 = arith.constant 0 : i32
    return %c0_i32, %c0_i32_0 : i32, i32
  }
  func.func @transform_3(%arg0: i32) -> (i32, i32, i32) {
    %c0_i32 = arith.constant 0 : i32
    %c0_i32_0 = arith.constant 0 : i32
    %c0_i32_1 = arith.constant 0 : i32
    return %arg0, %c0_i32, %c0_i32_0 : i32, i32, i32
  }
}

</mosaic_0001>

<llo_original>
// kernel: tpu_custom_call.1
$region0: #{tpu_custom_call.1}
  #allocation0 [shape = 'u32[]', space=smem, size = 0x4, offset = 0x4, fixed_abs, tag = 'smem constant byte address 0x4 - core index']
  #allocation1 [shape = 'u32[144,128]{1,0:T(1,128)}', space=vmem, size = 0x12000, scoped, tag = 'internal scratch']
  #allocation2 [shape = 'f32[1,1]{1,0:T(1,128)S(1)}', space=vmem, size = 0x200, scoped, tag = 'scoped memory for tpu_custom_call.1']
  %s0 = inlined_call_operand.vmem [shape: f32[16,128], index: 0, kind: input, shape index: {}]
  %s1 = inlined_call_operand.vmem [shape: f32[128,1], index: 1, kind: input, shape index: {}]
  %s2 = inlined_call_operand.<no memory space> [shape: f32[1,1], index: 2, kind: input, shape index: {}]
  %s3 = inlined_call_operand.hbm [shape: f32[2,1,8], index: 3, kind: output, shape index: {}]
  %s4 = sld [smem:[#allocation0]]
  $region45: #{tpu_custom_call.1} parent=0
    _
  %s6 = ssub.s32 1, %s4
  %s7 = scalar_select 0, %s6, %s4
  %v8 = vstv %s2
  %9 = vst [vmem:[#allocation2] sm:$0x1] %v8
  $region1: #{tpu_custom_call.1} parent=0
    #allocation3 [shape = 'u8[1024]{0}', space=vmem, size = 0x400, scoped, tag = 'output window, operand 0']
    #allocation4 [shape = 's32[2]{0}', space=sflag, size = 0x8, scoped, tag = 'scoped memory for tpu_custom_call.1']
    %10 = vsyncpa [#allocation4], 0
    %s11 = scalar_lea.sflag [#allocation4], 1
    %12 = vsyncpa %s11, 0
    loop: start=0, step=1, limit=4
    $region2: #{tpu_custom_call.1} parent=1 // loop_pre_header
      _
    $region3: #{tpu_custom_call.1} parent=1 // loop_header
      %s14 = sphi 0, %s18
      %p15 = scmp.ge.s32.totalorder %s14, 4
      %s24 = sphi 0, %s26
      %s27 = sphi 0, %s24
      %s28 = sphi 0, %s27
      %s44 = sphi 0, %s28
      %s48 = sphi 0, %s48
      %s50 = sphi 0, %s48
      %s51 = sphi 0, %s50
      %s65 = sphi 0, %s51
      %s69 = sphi 0, %s69
      %s71 = sphi 0, %s69
      %s72 = sphi 0, %s71
      %s86 = sphi 0, %s72
      %s92 = sphi 0, %s94
      %s95 = sphi 0, %s92
      %s96 = sphi 0, %s95
      %s112 = sphi 0, %s96
    $region4: #{tpu_custom_call.1} parent=1 // loop_header_branch
      %17 = sbr.rel (%p15) target = $region8
    $region5: #{tpu_custom_call.1} parent=1 // loop_body
      %s19 = ssub.s32 %s14, 1
      %s20 = ssub.s32 %s14, 2
      %s21 = sadd.s32 %s14, 1
      %s22 = ssub.s32 %s14, %s21
      %p23 = scmp.eq.s32.totalorder %s22, 0
      %s25 = sadd.s32 %s24, 1
      %s26 = scalar_select %p23, %s24, %s25
      %p29 = pneg %p23
      %p30 = scmp.eq.s32.totalorder %s14, 1
      %p31 = por %p29, %p30
      %p32 = scmp.ne.s32.totalorder %s24, %s27
      %p33 = scmp.eq.s32.totalorder %s14, 0
      %p34 = por %p32, %p33
      %p35 = scmp.ne.s32.totalorder %s24, %s27
      %p36 = scmp.eq.s32.totalorder %s19, 1
      %p37 = por %p35, %p36
      %p38 = scmp.ne.s32.totalorder %s27, %s28
      %p39 = scmp.eq.s32.totalorder %s19, 0
      %p40 = por %p38, %p39
      %p41 = scmp.ne.s32.totalorder %s27, %s28
      %p42 = scmp.eq.s32.totalorder %s20, 1
      %p43 = por %p41, %p42
      %p45 = scmp.ne.s32.totalorder %s28, %s44
      %p46 = scmp.eq.s32.totalorder %s20, 0
      %p47 = por %p45, %p46
      %s49 = sadd.s32 %s48, 1
      %p52 = scmp.eq.s32.totalorder %s14, 1
      %p53 = scmp.ne.s32.totalorder %s48, %s50
      %p54 = scmp.eq.s32.totalorder %s14, 0
      %p55 = por %p53, %p54
      %p56 = scmp.ne.s32.totalorder %s48, %s50
      %p57 = scmp.eq.s32.totalorder %s19, 1
      %p58 = por %p56, %p57
      %p59 = scmp.ne.s32.totalorder %s50, %s51
      %p60 = scmp.eq.s32.totalorder %s19, 0
      %p61 = por %p59, %p60
      %p62 = scmp.ne.s32.totalorder %s50, %s51
      %p63 = scmp.eq.s32.totalorder %s20, 1
      %p64 = por %p62, %p63
      %p66 = scmp.ne.s32.totalorder %s51, %s65
      %p67 = scmp.eq.s32.totalorder %s20, 0
      %p68 = por %p66, %p67
      %s70 = sadd.s32 %s69, 1
      %p73 = scmp.eq.s32.totalorder %s14, 1
      %p74 = scmp.ne.s32.totalorder %s69, %s71
      %p75 = scmp.eq.s32.totalorder %s14, 0
      %p76 = por %p74, %p75
      %p77 = scmp.ne.s32.totalorder %s69, %s71
      %p78 = scmp.eq.s32.totalorder %s19, 1
      %p79 = por %p77, %p78
      %p80 = scmp.ne.s32.totalorder %s71, %s72
      %p81 = scmp.eq.s32.totalorder %s19, 0
      %p82 = por %p80, %p81
      %p83 = scmp.ne.s32.totalorder %s71, %s72
      %p84 = scmp.eq.s32.totalorder %s20, 1
      %p85 = por %p83, %p84
      %p87 = scmp.ne.s32.totalorder %s72, %s86
      %p88 = scmp.eq.s32.totalorder %s20, 0
      %p89 = por %p87, %p88
      %s90 = ssub.s32 %s14, %s21
      %p91 = scmp.eq.s32.totalorder %s90, 0
      %s93 = sadd.s32 %s92, 1
      %s94 = scalar_select %p91, %s92, %s93
      %p97 = pneg %p91
      %p98 = scmp.eq.s32.totalorder %s14, 1
      %p99 = por %p97, %p98
      %p100 = scmp.ne.s32.totalorder %s92, %s95
      %p101 = scmp.eq.s32.totalorder %s14, 0
      %p102 = por %p100, %p101
      %p103 = scmp.ne.s32.totalorder %s92, %s95
      %p104 = scmp.eq.s32.totalorder %s19, 1
      %p105 = por %p103, %p104
      %p106 = scmp.ne.s32.totalorder %s95, %s96
      %p107 = scmp.eq.s32.totalorder %s19, 0
      %p108 = por %p106, %p107
      %p109 = scmp.ne.s32.totalorder %s95, %s96
      %p110 = scmp.eq.s32.totalorder %s20, 1
      %p111 = por %p109, %p110
      %p113 = scmp.ne.s32.totalorder %s96, %s112
      %p114 = scmp.eq.s32.totalorder %s20, 0
      %p115 = por %p113, %p114
      %p116 = scmp.le.s32.totalorder 1, %s14
      %p117 = scmp.lt.s32.totalorder %s14, 3
      %p118 = pnand %p116, %p117
      %p119 = pneg %p118
      // Predicated region
      $region9: #{tpu_custom_call.1} parent=5 // pred_check
        _
      $region10: #{tpu_custom_call.1} parent=5 // pred_check_branch
        %121 = sbr.rel (%p118) target = $region12
      $region11: #{tpu_custom_call.1} parent=5 // pred_region
        %s122 = ssub.s32 %s14, 1
        // Predicated region
        $region13: #{tpu_custom_call.1} parent=11 // pred_check
          %p123 = pneg %p61
        $region14: #{tpu_custom_call.1} parent=11 // pred_check_branch
          %125 = sbr.rel (%p123) target = $region16
        $region15: #{tpu_custom_call.1} parent=11 // pred_region
          _
        $region16: #{tpu_custom_call.1} parent=11 // pred_fallthru
          _
        // Predicated region
        $region17: #{tpu_custom_call.1} parent=11 // pred_check
          %p126 = pneg %p82
        $region18: #{tpu_custom_call.1} parent=11 // pred_check_branch
          %128 = sbr.rel (%p126) target = $region20
        $region19: #{tpu_custom_call.1} parent=11 // pred_region
          _
        $region20: #{tpu_custom_call.1} parent=11 // pred_fallthru
          _
      $region12: #{tpu_custom_call.1} parent=5 // pred_fallthru
        _
      %p129 = scmp.lt.s32.totalorder %s14, 2
      // Predicated region
      $region21: #{tpu_custom_call.1} parent=5 // pred_check
        %p130 = pneg %p129
      $region22: #{tpu_custom_call.1} parent=5 // pred_check_branch
        %132 = sbr.rel (%p130) target = $region24
      $region23: #{tpu_custom_call.1} parent=5 // pred_region
        // Predicated region
        $region25: #{tpu_custom_call.1} parent=23 // pred_check
          %p133 = pneg %p34
        $region26: #{tpu_custom_call.1} parent=23 // pred_check_branch
          %135 = sbr.rel (%p133) target = $region28
        $region27: #{tpu_custom_call.1} parent=23 // pred_region
          %p136 = scmp.lt.s32.totalorder %s14, 1
          %s137 = scalar_select %p136, %s14, 1
          %s138 = smul.addr %s137, 8
          %s139 = scalar_lea.vmem %s0, %s138
        $region28: #{tpu_custom_call.1} parent=23 // pred_fallthru
          _
      $region24: #{tpu_custom_call.1} parent=5 // pred_fallthru
        _
      %p140 = scmp.le.s32.totalorder 1, %s14
      %p141 = scmp.lt.s32.totalorder %s14, 3
      %p142 = pnand %p140, %p141
      %p143 = pneg %p142
      // Predicated region
      $region29: #{tpu_custom_call.1} parent=5 // pred_check
        _
      $region30: #{tpu_custom_call.1} parent=5 // pred_check_branch
        %145 = sbr.rel (%p142) target = $region32
      $region31: #{tpu_custom_call.1} parent=5 // pred_region
        %s146 = ssub.s32 %s14, 1
        %p147 = scmp.lt.s32.totalorder %s19, 1
        %s148 = scalar_select %p147, %s19, 1
        %s149 = smul.addr %s148, 8
        %s150 = scalar_lea.vmem %s0, %s149
        %p151 = pneg %p40
        %p152 = pneg %p37
        %p153 = pneg %p61
        %p154 = pneg %p58
        %p155 = pneg %p82
        %p156 = pneg %p79
        %p157 = pneg %p108
        %p158 = pneg %p105
        %s159 = sand.u32 %s95, 1
        %s160 = scalar_lea.sflag [#allocation4], %s159
        %s161 = sand.u32 %s95, 1
        %s162 = scalar_lea.vmem [#allocation3], %s161
        %p163 = scmp.lt.s32.totalorder %s19, 1
        %s164 = scalar_select %p163, %s19, 1
        %s165 = smul.addr %s164, 8
        %s166 = scalar_lea.vmem %s0, %s165
        %v167 = vld [vmem:[%s166] sm:$0xff]
        %v168 = vmul.f32 %v167, %v167
        %169 = vadd.xlane.f32.xlu0 %v168
        %v170 = vpop.xlane.xlu0 %169
        %v171 = vmax.f32 %v170, 1e-24
        %v172 = vrsqrt.pop %v171
        %v173 = vld [vmem:[%s1] sm:$0xff]
        %v174 = vld [vmem:[%s1 + $0x8] sm:$0xff]
        %v175 = vld [vmem:[%s1 + $0x10] sm:$0xff]
        %v176 = vld [vmem:[%s1 + $0x18] sm:$0xff]
        %v177 = vld [vmem:[%s1 + $0x20] sm:$0xff]
        %v178 = vld [vmem:[%s1 + $0x28] sm:$0xff]
        %v179 = vld [vmem:[%s1 + $0x30] sm:$0xff]
        %v180 = vld [vmem:[%s1 + $0x38] sm:$0xff]
        %v181 = vld [vmem:[%s1 + $0x40] sm:$0xff]
        %v182 = vld [vmem:[%s1 + $0x48] sm:$0xff]
        %v183 = vld [vmem:[%s1 + $0x50] sm:$0xff]
        %v184 = vld [vmem:[%s1 + $0x58] sm:$0xff]
        %v185 = vld [vmem:[%s1 + $0x60] sm:$0xff]
        %v186 = vld [vmem:[%s1 + $0x68] sm:$0xff]
        %v187 = vld [vmem:[%s1 + $0x70] sm:$0xff]
        %v188 = vld [vmem:[%s1 + $0x78] sm:$0xff]
        %189 = vmatprep.subr.mxu0 0.0
        %190 = vmatpush1.msra.mxu0 %v188
        %191 = vmatprep.subr.mxu0 0.0
        %192 = vmatpush1.msra.mxu0 %v187
        %193 = vmatprep.subr.mxu0 0.0
        %194 = vmatpush1.msra.mxu0 %v186
        %195 = vmatprep.subr.mxu0 0.0
        %196 = vmatpush1.msra.mxu0 %v185
        %197 = vmatprep.subr.mxu0 0.0
        %198 = vmatpush1.msra.mxu0 %v184
        %199 = vmatprep.subr.mxu0 0.0
        %200 = vmatpush1.msra.mxu0 %v183
        %201 = vmatprep.subr.mxu0 0.0
        %202 = vmatpush1.msra.mxu0 %v182
        %203 = vmatprep.subr.mxu0 0.0
        %204 = vmatpush1.msra.mxu0 %v181
        %205 = vmatprep.subr.mxu0 0.0
        %206 = vmatpush1.msra.mxu0 %v180
        %207 = vmatprep.subr.mxu0 0.0
        %208 = vmatpush1.msra.mxu0 %v179
        %209 = vmatprep.subr.mxu0 0.0
        %210 = vmatpush1.msra.mxu0 %v178
        %211 = vmatprep.subr.mxu0 0.0
        %212 = vmatpush1.msra.mxu0 %v177
        %213 = vmatprep.subr.mxu0 0.0
        %214 = vmatpush1.msra.mxu0 %v176
        %215 = vmatprep.subr.mxu0 0.0
        %216 = vmatpush1.msra.mxu0 %v175
        %217 = vmatprep.subr.mxu0 0.0
        %218 = vmatpush1.msra.mxu0 %v174
        %219 = vmatprep.subr.mxu0 0.0
        %220 = vmatpush1.msra.mxu0 %v173
        %221 = vmatprep.subr.mxu0 0.0
        %222 = vmatpush2.msra.mxu0 0.0
        %223 = vmatprep.subr.mxu0 0.0
        %224 = vmatpush2.msra.mxu0 0.0
        %225 = vmatprep.subr.mxu0 0.0
        %226 = vmatpush2.msra.mxu0 0.0
        %227 = vmatprep.subr.mxu0 0.0
        %228 = vmatpush2.msra.mxu0 0.0
        %229 = vmatprep.subr.mxu0 0.0
        %230 = vmatpush2.msra.mxu0 0.0
        %231 = vmatprep.subr.mxu0 0.0
        %232 = vmatpush2.msra.mxu0 0.0
        %233 = vmatprep.subr.mxu0 0.0
        %234 = vmatpush2.msra.mxu0 0.0
        %235 = vmatprep.subr.mxu0 0.0
        %236 = vmatpush2.msra.mxu0 0.0
        %237 = vmatprep.subr.mxu0 0.0
        %238 = vmatpush2.msra.mxu0 0.0
        %239 = vmatprep.subr.mxu0 0.0
        %240 = vmatpush2.msra.mxu0 0.0
        %241 = vmatprep.subr.mxu0 0.0
        %242 = vmatpush2.msra.mxu0 0.0
        %243 = vmatprep.subr.mxu0 0.0
        %244 = vmatpush2.msra.mxu0 0.0
        %245 = vmatprep.subr.mxu0 0.0
        %246 = vmatpush2.msra.mxu0 0.0
        %247 = vmatprep.subr.mxu0 0.0
        %248 = vmatpush2.msra.mxu0 0.0
        %249 = vmatprep.subr.mxu0 0.0
        %250 = vmatpush2.msra.mxu0 0.0
        %251 = vmatprep.subr.mxu0 0.0
        %252 = vmatpush2.msra.mxu0 0.0
        %253 = vmatprep.mubr.f32.mxu0 0.0
        %254 = vmatmul.mubr.f32.gmra.mxu0 %v167
        %v255 = vpop.f32.mrf.mxu0
        %v256 = vadd.f32 0.0, %v255
        %v257 = vpop.f32.mrf.mxu0
        %258 = vdwg.mxu0
        %v259 = vmul.f32 %v172, %v256
        %v260 = vld [vmem:[#allocation2] sm:$0x1]
        %v262 = vlaneseq
        %v263 = vshrl.u32 %v262, 7
        %v264 = vsub.s32 0, %v263
        %v265 = vrot.slane %v260, %v264
        %v267 = vadd.f32 %v259, %v265
        %269 = vset.pattern.permute.xlu0 0
        %270 = vperm.xlu0 %269, %v267
        %v271 = vpop.permute.xlu0 %270
        %v272 = vlaneseq
        %v273 = vand.u32 %v272, 127
        %v274 = vlaneseq
        %v275 = vshrl.u32 %v274, 7
        %v276 = vsub.s32 %v273, %v275
        %v277 = vrot.slane %v271, %v276
        %vm279 = vcmask 57344
        %280 = vst.msk [vmem:[%s162] sm:$0x1] %vm279, %v277
        %s281 = sand.u32 %s95, 1
        %s282 = scalar_lea.sflag [#allocation4], %s281
        %s283 = sand.u32 %s95, 1
        %s284 = scalar_lea.vmem [#allocation3], %s283
        // Predicated region
        $region33: #{tpu_custom_call.1} parent=31 // pred_check
          %p285 = pneg %p105
        $region34: #{tpu_custom_call.1} parent=31 // pred_check_branch
          %287 = sbr.rel (%p285) target = $region36
        $region35: #{tpu_custom_call.1} parent=31 // pred_region
          %s289 = ssub.s32 16, 16
          %290 = vsyncadd %s282, %s289
          %s291 = smul.addr %s19, 16
          %s292 = scalar_lea.hbm %s3, %s291
          %s294 = sshll.u32 %s284, 4
          %s295 = int_to_ptr.vmem [resolvable:$true] %s294
          %297 = dma.vmem_to_hbm [thread:$0]  %s295, 16, %s292, %s282
        $region36: #{tpu_custom_call.1} parent=31 // pred_fallthru
          _
      $region32: #{tpu_custom_call.1} parent=5 // pred_fallthru
        _
      %p298 = scmp.le.s32.totalorder 2, %s14
      // Predicated region
      $region37: #{tpu_custom_call.1} parent=5 // pred_check
        %p299 = pneg %p298
      $region38: #{tpu_custom_call.1} parent=5 // pred_check_branch
        %301 = sbr.rel (%p299) target = $region40
      $region39: #{tpu_custom_call.1} parent=5 // pred_region
        %s302 = ssub.s32 %s14, 2
        // Predicated region
        $region41: #{tpu_custom_call.1} parent=39 // pred_check
          %p303 = pneg %p111
        $region42: #{tpu_custom_call.1} parent=39 // pred_check_branch
          %305 = sbr.rel (%p303) target = $region44
        $region43: #{tpu_custom_call.1} parent=39 // pred_region
          %s306 = sand.u32 %s96, 1
          %s307 = scalar_lea.sflag [#allocation4], %s306
          %s308 = sand.u32 %s96, 1
          %s309 = scalar_lea.vmem [#allocation3], %s308
          %310 = dma.done %s307, 16
        $region44: #{tpu_custom_call.1} parent=39 // pred_fallthru
          _
      $region40: #{tpu_custom_call.1} parent=5 // pred_fallthru
        _
    $region6: #{tpu_custom_call.1} parent=1 // loop_footer
      %s18 = sadd.s32 1, %s14
    $region7: #{tpu_custom_call.1} parent=1 // loop_footer_branch
      %13 = sbr.rel target = $region3
    $region8: #{tpu_custom_call.1} parent=1 // loop_exit
      _
    %311 = vsyncpa [#allocation4], 1
    %s312 = scalar_lea.sflag [#allocation4], 1
    %313 = vsyncpa %s312, 1

</llo_original>
